<compile_context>
chip_gen: v7x
topology: tpu7x:2x2x1
jax: 0.10.0
libtpu: 0.0.40
codegen_flags: <defaults>
</compile_context>

<pallas_src>
import jax
import jax.numpy as jnp
import numpy as np
from jax import lax
from jax.experimental import pallas as pl
from jax.experimental.pallas import tpu as pltpu

NUM_CLASSES = 10
LANE = 128            # logits padded to one full lane tile
NEG_INF = -1e30       # bias for padded logit lanes -> exp() == 0 in softmax


# ------------------------------ fused kernel --------------------------------

def fused_net_kernel(x_ref, w1_ref, b1_ref, w2_ref, b2_ref, w3_ref, b3_ref,
                     out_ref):
    """(folded conv+fc_1) -> clamp -> fc_2 -> clamp -> fc_3 -> log_softmax.

    x_ref:   (BT, Din)   bf16  batch tile of the flattened NCHW input
    w1_ref:  (Din, F1)   bf16  folded conv+flatten+fc_1 weight
    b1_ref:  (1, F1)     f32   folded bias (fc_1 bias + conv-bias term)
    w2_ref:  (F1, F1)    bf16  fc_2 weight, transposed
    b2_ref:  (1, F1)     f32
    w3_ref:  (F1, LANE)  bf16  fc_3 weight transposed, zero-padded to 128 lanes
    b3_ref:  (1, LANE)   f32   fc_3 bias, padded lanes = NEG_INF
    out_ref: (BT, LANE)  f32   log_softmax logits (first NUM_CLASSES are real)
    """
    a1 = jnp.dot(x_ref[...], w1_ref[...], preferred_element_type=jnp.float32)
    a1 = jnp.maximum(a1 + b1_ref[...], 0.0)                       # clamp(min=0)

    a2 = jnp.dot(a1.astype(jnp.bfloat16), w2_ref[...],
                 preferred_element_type=jnp.float32)
    a2 = jnp.maximum(a2 + b2_ref[...], 0.0)                       # clamp(min=0)

    z = jnp.dot(a2.astype(jnp.bfloat16), w3_ref[...],
                preferred_element_type=jnp.float32) + b3_ref[...]

    # log_softmax over the lane axis; padded lanes carry -1e30 so they drop
    # out of both the max and the sum (no corruption of the normalizer).
    m = jnp.max(z, axis=1, keepdims=True)
    e = jnp.exp(z - m)
    out_ref[...] = (z - m) - jnp.log(jnp.sum(e, axis=1, keepdims=True))


def _tpu_compiler_params():
    """dimension_semantics=('parallel',) on the batch-tile axis (v7x 2-TC)."""
    cp_cls = getattr(pltpu, "CompilerParams", None) or getattr(
        pltpu, "TPUCompilerParams", None)
    if cp_cls is None:
        return {}
    return {"compiler_params": cp_cls(dimension_semantics=("parallel",))}


# ---------------- one-time parameter relayout / folding (hoisted) -----------

def prepare_params(params, h, w):
    """Relayout, fold and cast all weights ONCE, outside the forward path."""
    wc, bc, w1, b1, w2, b2, w3, b3 = params
    c_out, c_in, kh, kw = wc.shape                      # (6, 3, 3, 3)
    f1 = w1.shape[0]                                    # 64
    hw = h * w
    assert w1.shape[1] == c_out * hw, "fc_1.in_features must equal Cout*H*W"
    hp = lax.Precision.HIGHEST

    # ---- fold conv(pad=1) + flatten + fc_1 into one (Cin*H*W, F1) matrix ---
    #   a1[n, j] = b_fold[j] + sum_{ci,p,q} x[n,ci,p,q] * W_fold[j,ci,p,q]
    #   W_fold[j,ci,p,q] = sum_{c,ky,kx} wc[c,ci,ky,kx] * W1r[j,c,p-ky+1,q-kx+1]
    # (terms whose conv-output index falls outside the H x W grid are zero,
    #  handled by the 1-pixel zero pad of W1r below).
    w1r = w1.reshape(f1, c_out, h, w)
    m_pad = jnp.pad(w1r, ((0, 0), (0, 0), (1, 1), (1, 1)))
    w_fold = jnp.zeros((f1, c_in, h, w), jnp.float32)
    for ky in range(kh):
        for kx in range(kw):
            sl = m_pad[:, :, 2 - ky:2 - ky + h, 2 - kx:2 - kx + w]  # (F1,Co,H,W)
            w_fold = w_fold + jnp.einsum('ci,jcpq->jipq',
                                         wc[:, :, ky, kx], sl, precision=hp)
    w1f = w_fold.reshape(f1, c_in * hw).T.astype(jnp.bfloat16)      # (Din, F1)
    b_fold = b1 + jnp.einsum('c,jchw->j', bc, w1r, precision=hp)
    b1_row = b_fold.reshape(1, f1).astype(jnp.float32)

    # ---- fc_2 / fc_3: transposed, bf16 MXU operands, lane-padded logits ----
    w2_t = w2.T.astype(jnp.bfloat16)
    b2_row = b2.reshape(1, f1).astype(jnp.float32)
    n_cls = w3.shape[0]
    w3_t = jnp.zeros((f1, LANE), jnp.float32).at[:, :n_cls].set(w3.T)
    w3_t = w3_t.astype(jnp.bfloat16)
    b3_row = jnp.full((1, LANE), NEG_INF, jnp.float32).at[0, :n_cls].set(b3)
    return (w1f, b1_row, w2_t, b2_row, w3_t, b3_row)


# ------------------------------ forward pass --------------------------------

def net_forward(x, prepped):
    """x: (N, 3, H, W) NCHW f32 with 3*H*W == fc_1.in_features (= 3072)."""
    w1f, b1, w2_t, b2, w3_t, b3 = prepped
    n = x.shape[0]
    din = w1f.shape[0]

    # Only input-dependent glue left: flatten + bf16 cast (+ batch pad to tile).
    x_flat = x.reshape(n, din).astype(jnp.bfloat16)
    bt = 256 if n > 256 else max(8, ((n + 7) // 8) * 8)   # MXU-friendly M tile
    n_pad = ((n + bt - 1) // bt) * bt
    if n_pad != n:
        x_flat = jnp.pad(x_flat, ((0, n_pad - n), (0, 0)))

    out = pl.pallas_call(
        fused_net_kernel,
        out_shape=jax.ShapeDtypeStruct((n_pad, LANE), jnp.float32),
        grid=(n_pad // bt,),
        in_specs=[
            pl.BlockSpec((bt, din), lambda i: (i, 0)),     # batch tile streams
            pl.BlockSpec(w1f.shape, lambda i: (0, 0)),     # weights stay VMEM-
            pl.BlockSpec(b1.shape, lambda i: (0, 0)),      # resident across the
            pl.BlockSpec(w2_t.shape, lambda i: (0, 0)),    # whole grid
            pl.BlockSpec(b2.shape, lambda i: (0, 0)),
            pl.BlockSpec(w3_t.shape, lambda i: (0, 0)),
            pl.BlockSpec(b3.shape, lambda i: (0, 0)),
        ],
        out_specs=pl.BlockSpec((bt, LANE), lambda i: (i, 0)),
        **_tpu_compiler_params(),
    )(x_flat, w1f, b1, w2_t, b2, w3_t, b3)
    return out[:n, :NUM_CLASSES]


# ------------------------ pure-JAX reference (NCHW) --------------------------

def net_reference(x, params):
    wc, bc, w1, b1, w2, b2, w3, b3 = params
    conv = lax.conv_general_dilated(
        x, wc, window_strides=(1, 1), padding="SAME",
        dimension_numbers=("NCHW", "OIHW", "NCHW"),
        precision=lax.Precision.HIGHEST)
    conv = conv + bc[None, :, None, None]
    flat = conv.reshape(x.shape[0], -1)
    hp = lax.Precision.HIGHEST
    h1 = jnp.maximum(jnp.dot(flat, w1.T, precision=hp) + b1, 0.0)
    h2 = jnp.maximum(jnp.dot(h1, w2.T, precision=hp) + b2, 0.0)
    z = jnp.dot(h2, w3.T, precision=hp) + b3
    return jax.nn.log_softmax(z, axis=1)


# ----------------------------------- main ------------------------------------

def _uniform(key, shape, bound):
    return jax.random.uniform(key, shape, jnp.float32, -bound, bound)


if __name__ == "__main__":
    key = jax.random.PRNGKey(0)
    ks = jax.random.split(key, 9)

    # Parameter shapes exactly as in Net.__init__ (PyTorch-style U(-1/sqrt(fan), ..)):
    wc = _uniform(ks[0], (6, 3, 3, 3), 1.0 / np.sqrt(3 * 3 * 3))   # conv weight
    bc = _uniform(ks[1], (6,),         1.0 / np.sqrt(3 * 3 * 3))   # conv bias
    w1 = _uniform(ks[2], (64, 3072),   1.0 / np.sqrt(3072))        # fc_1
    b1 = _uniform(ks[3], (64,),        1.0 / np.sqrt(3072))
    w2 = _uniform(ks[4], (64, 64),     1.0 / np.sqrt(64))          # fc_2
    b2 = _uniform(ks[5], (64,),        1.0 / np.sqrt(64))
    w3 = _uniform(ks[6], (10, 64),     1.0 / np.sqrt(64))          # fc_3
    b3 = _uniform(ks[7], (10,),        1.0 / np.sqrt(64))
    params = (wc, bc, w1, b1, w2, b2, w3, b3)

    # Input: NCHW with H*W = 512 so flatten(conv(x)) has 6*512 = 3072 features.
    H, W = 16, 32
    x = jax.random.normal(ks[8], (2, 3, H, W), jnp.float32)

    # Weight folding / relayouts / bf16 casts done ONCE, outside the forward path.
    prepped = jax.tree_util.tree_map(jax.block_until_ready,
                                     prepare_params(params, H, W))

    fwd = jax.jit(net_forward)
    out = jax.block_until_ready(fwd(x, prepped))
    ref = jax.block_until_ready(net_reference(x, params))

    assert out.shape == (2, NUM_CLASSES), out.shape
    np.testing.assert_allclose(np.asarray(out), np.asarray(ref),
                               rtol=2e-2, atol=2e-2)
    print("KERNEL_OK")
</pallas_src>

<mosaic_0001>
module attributes {stable_mosaic.version = 11 : i64} {
  func.func @fused_net_kernel(%arg0: i32, %arg1: memref<8x1536xbf16, #tpu.memory_space<vmem>>, %arg2: memref<1536x64xbf16, #tpu.memory_space<vmem>>, %arg3: memref<1x64xf32, #tpu.memory_space<vmem>>, %arg4: memref<64x64xbf16, #tpu.memory_space<vmem>>, %arg5: memref<1x64xf32, #tpu.memory_space<vmem>>, %arg6: memref<64x128xbf16, #tpu.memory_space<vmem>>, %arg7: memref<1x128xf32, #tpu.memory_space<vmem>>, %arg8: memref<8x128xf32, #tpu.memory_space<vmem>>) attributes {dimension_semantics = [#tpu.dimension_semantics<parallel>], iteration_bounds = array<i64: 1>, scalar_prefetch = 0 : i64, scratch_operands = 0 : i64, tpu.core_type = #tpu.core_type<tc>, window_params = [{transform_indices = @transform_0, window_bounds = array<i64: 8, 1536>}, {pipeline_mode = #tpu.pipeline_mode<synchronous>, transform_indices = @transform_1, window_bounds = array<i64: 1536, 64>}, {pipeline_mode = #tpu.pipeline_mode<synchronous>, transform_indices = @transform_2, window_bounds = array<i64: 1, 64>}, {pipeline_mode = #tpu.pipeline_mode<synchronous>, transform_indices = @transform_3, window_bounds = array<i64: 64, 64>}, {pipeline_mode = #tpu.pipeline_mode<synchronous>, transform_indices = @transform_4, window_bounds = array<i64: 1, 64>}, {pipeline_mode = #tpu.pipeline_mode<synchronous>, transform_indices = @transform_5, window_bounds = array<i64: 64, 128>}, {pipeline_mode = #tpu.pipeline_mode<synchronous>, transform_indices = @transform_6, window_bounds = array<i64: 1, 128>}, {transform_indices = @transform_7, window_bounds = array<i64: 8, 128>}]} {
    %c0 = arith.constant 0 : index
    %c0_0 = arith.constant 0 : index
    %0 = vector.load %arg1[%c0, %c0_0] : memref<8x1536xbf16, #tpu.memory_space<vmem>>, vector<8x1536xbf16>
    %c0_1 = arith.constant 0 : index
    %c0_2 = arith.constant 0 : index
    %1 = vector.load %arg2[%c0_1, %c0_2] : memref<1536x64xbf16, #tpu.memory_space<vmem>>, vector<1536x64xbf16>
    %cst = arith.constant dense<0.000000e+00> : vector<8x64xf32>
    %2 = tpu.matmul %0, %1, %cst {dimension_numbers = #tpu.dot_dimension_numbers<[1], [0], [0], [1], [0, 0, 1, 1], [], []>} : vector<8x1536xbf16>, vector<1536x64xbf16>, vector<8x64xf32> -> vector<8x64xf32>
    %c0_3 = arith.constant 0 : index
    %c0_4 = arith.constant 0 : index
    %3 = vector.load %arg3[%c0_3, %c0_4] : memref<1x64xf32, #tpu.memory_space<vmem>>, vector<1x64xf32>
    %4 = vector.broadcast %3 : vector<1x64xf32> to vector<8x64xf32>
    %5 = arith.addf %2, %4 : vector<8x64xf32>
    %cst_5 = arith.constant 0.000000e+00 : f32
    %6 = vector.broadcast %cst_5 : f32 to vector<8x64xf32>
    %7 = arith.maximumf %5, %6 : vector<8x64xf32>
    %8 = arith.truncf %7 : vector<8x64xf32> to vector<8x64xbf16>
    %c0_6 = arith.constant 0 : index
    %c0_7 = arith.constant 0 : index
    %9 = vector.load %arg4[%c0_6, %c0_7] : memref<64x64xbf16, #tpu.memory_space<vmem>>, vector<64x64xbf16>
    %cst_8 = arith.constant dense<0.000000e+00> : vector<8x64xf32>
    %10 = tpu.matmul %8, %9, %cst_8 {dimension_numbers = #tpu.dot_dimension_numbers<[1], [0], [0], [1], [0, 0, 1, 1], [], []>} : vector<8x64xbf16>, vector<64x64xbf16>, vector<8x64xf32> -> vector<8x64xf32>
    %c0_9 = arith.constant 0 : index
    %c0_10 = arith.constant 0 : index
    %11 = vector.load %arg5[%c0_9, %c0_10] : memref<1x64xf32, #tpu.memory_space<vmem>>, vector<1x64xf32>
    %12 = vector.broadcast %11 : vector<1x64xf32> to vector<8x64xf32>
    %13 = arith.addf %10, %12 : vector<8x64xf32>
    %cst_11 = arith.constant 0.000000e+00 : f32
    %14 = vector.broadcast %cst_11 : f32 to vector<8x64xf32>
    %15 = arith.maximumf %13, %14 : vector<8x64xf32>
    %16 = arith.truncf %15 : vector<8x64xf32> to vector<8x64xbf16>
    %c0_12 = arith.constant 0 : index
    %c0_13 = arith.constant 0 : index
    %17 = vector.load %arg6[%c0_12, %c0_13] : memref<64x128xbf16, #tpu.memory_space<vmem>>, vector<64x128xbf16>
    %cst_14 = arith.constant dense<0.000000e+00> : vector<8x128xf32>
    %18 = tpu.matmul %16, %17, %cst_14 {dimension_numbers = #tpu.dot_dimension_numbers<[1], [0], [0], [1], [0, 0, 1, 1], [], []>} : vector<8x64xbf16>, vector<64x128xbf16>, vector<8x128xf32> -> vector<8x128xf32>
    %c0_15 = arith.constant 0 : index
    %c0_16 = arith.constant 0 : index
    %19 = vector.load %arg7[%c0_15, %c0_16] : memref<1x128xf32, #tpu.memory_space<vmem>>, vector<1x128xf32>
    %20 = vector.broadcast %19 : vector<1x128xf32> to vector<8x128xf32>
    %21 = arith.addf %18, %20 : vector<8x128xf32>
    %cst_17 = arith.constant dense<0xFF800000> : vector<8xf32>
    %22 = vector.multi_reduction <maximumf>, %21, %cst_17 [1] : vector<8x128xf32> to vector<8xf32>
    %23 = vector.shape_cast %22 : vector<8xf32> to vector<8x1xf32>
    %24 = vector.broadcast %23 : vector<8x1xf32> to vector<8x128xf32>
    %25 = arith.subf %21, %24 : vector<8x128xf32>
    %26 = math.exp %25 : vector<8x128xf32>
    %27 = vector.broadcast %23 : vector<8x1xf32> to vector<8x128xf32>
    %28 = arith.subf %21, %27 : vector<8x128xf32>
    %cst_18 = arith.constant dense<0.000000e+00> : vector<8xf32>
    %29 = vector.multi_reduction <add>, %26, %cst_18 [1] : vector<8x128xf32> to vector<8xf32>
    %30 = vector.shape_cast %29 : vector<8xf32> to vector<8x1xf32>
    %31 = math.log %30 : vector<8x1xf32>
    %32 = vector.broadcast %31 : vector<8x1xf32> to vector<8x128xf32>
    %33 = arith.subf %28, %32 : vector<8x128xf32>
    %c0_19 = arith.constant 0 : index
    %c0_20 = arith.constant 0 : index
    %34 = vector.load %arg8[%c0_19, %c0_20] : memref<8x128xf32, #tpu.memory_space<vmem>>, vector<8x128xf32>
    tpu.vector_store %arg8[%c0_19, %c0_20], %33 {strides = array<i32>} : memref<8x128xf32, #tpu.memory_space<vmem>>, vector<8x128xf32>,
    return
  }
  func.func @transform_0(%arg0: i32) -> (i32, i32) {
    %c0_i32 = arith.constant 0 : i32
    %c0_i32_0 = arith.constant 0 : i32
    return %arg0, %c0_i32 : i32, i32
  }
  func.func @transform_1(%arg0: i32) -> (i32, i32) {
    %c0_i32 = arith.constant 0 : i32
    %c0_i32_0 = arith.constant 0 : i32
    %c0_i32_1 = arith.constant 0 : i32
    return %c0_i32, %c0_i32_0 : i32, i32
  }
  func.func @transform_2(%arg0: i32) -> (i32, i32) {
    %c0_i32 = arith.constant 0 : i32
    %c0_i32_0 = arith.constant 0 : i32
    %c0_i32_1 = arith.constant 0 : i32
    return %c0_i32, %c0_i32_0 : i32, i32
  }
  func.func @transform_3(%arg0: i32) -> (i32, i32) {
    %c0_i32 = arith.constant 0 : i32
    %c0_i32_0 = arith.constant 0 : i32
    %c0_i32_1 = arith.constant 0 : i32
    return %c0_i32, %c0_i32_0 : i32, i32
  }
  func.func @transform_4(%arg0: i32) -> (i32, i32) {
    %c0_i32 = arith.constant 0 : i32
    %c0_i32_0 = arith.constant 0 : i32
    %c0_i32_1 = arith.constant 0 : i32
    return %c0_i32, %c0_i32_0 : i32, i32
  }
  func.func @transform_5(%arg0: i32) -> (i32, i32) {
    %c0_i32 = arith.constant 0 : i32
    %c0_i32_0 = arith.constant 0 : i32
    %c0_i32_1 = arith.constant 0 : i32
    return %c0_i32, %c0_i32_0 : i32, i32
  }
  func.func @transform_6(%arg0: i32) -> (i32, i32) {
    %c0_i32 = arith.constant 0 : i32
    %c0_i32_0 = arith.constant 0 : i32
    %c0_i32_1 = arith.constant 0 : i32
    return %c0_i32, %c0_i32_0 : i32, i32
  }
  func.func @transform_7(%arg0: i32) -> (i32, i32) {
    %c0_i32 = arith.constant 0 : i32
    %c0_i32_0 = arith.constant 0 : i32
    return %arg0, %c0_i32 : i32, i32
  }
}

</mosaic_0001>

<llo_original>
// kernel: net_forward.1
$region0: #{net_forward.1}
  #allocation0 [shape = 'u32[]', space=smem, size = 0x4, offset = 0x4, fixed_abs, tag = 'smem constant byte address 0x4 - core index']
  #allocation1 [shape = 'u32[144,128]{1,0:T(1,128)}', space=vmem, size = 0x12000, scoped, tag = 'internal scratch']
  %s0 = inlined_call_operand.vmem [shape: bf16[8,1536], index: 0, kind: input, shape index: {}]
  %s1 = inlined_call_operand.vmem [shape: bf16[1536,64], index: 1, kind: input, shape index: {}]
  %s2 = inlined_call_operand.vmem [shape: f32[1,64], index: 2, kind: input, shape index: {}]
  %s3 = inlined_call_operand.vmem [shape: bf16[64,64], index: 3, kind: input, shape index: {}]
  %s4 = inlined_call_operand.vmem [shape: f32[1,64], index: 4, kind: input, shape index: {}]
  %s5 = inlined_call_operand.vmem [shape: bf16[64,128], index: 5, kind: input, shape index: {}]
  %s6 = inlined_call_operand.vmem [shape: f32[1,128], index: 6, kind: input, shape index: {}]
  %s7 = inlined_call_operand.vmem [shape: f32[8,128], index: 7, kind: output, shape index: {}]
  %s8 = sld [smem:[#allocation0]]
  $region38: #{net_forward.1} parent=0
    _
  %s10 = ssub.s32 1, %s8
  %s11 = scalar_select 0, %s10, %s8
  // Predicated region
  $region2: #{net_forward.1} parent=0 // pred_check
    _
  $region3: #{net_forward.1} parent=0 // pred_check_branch
    %13 = sbr.rel (0) target = $region5
  $region4: #{net_forward.1} parent=0 // pred_region
    _
  $region5: #{net_forward.1} parent=0 // pred_fallthru
    _
  // Predicated region
  $region6: #{net_forward.1} parent=0 // pred_check
    _
  $region7: #{net_forward.1} parent=0 // pred_check_branch
    %15 = sbr.rel (0) target = $region9
  $region8: #{net_forward.1} parent=0 // pred_region
    _
  $region9: #{net_forward.1} parent=0 // pred_fallthru
    _
  // Predicated region
  $region10: #{net_forward.1} parent=0 // pred_check
    _
  $region11: #{net_forward.1} parent=0 // pred_check_branch
    %17 = sbr.rel (0) target = $region13
  $region12: #{net_forward.1} parent=0 // pred_region
    _
  $region13: #{net_forward.1} parent=0 // pred_fallthru
    _
  // Predicated region
  $region14: #{net_forward.1} parent=0 // pred_check
    _
  $region15: #{net_forward.1} parent=0 // pred_check_branch
    %19 = sbr.rel (0) target = $region17
  $region16: #{net_forward.1} parent=0 // pred_region
    _
  $region17: #{net_forward.1} parent=0 // pred_fallthru
    _
  // Predicated region
  $region18: #{net_forward.1} parent=0 // pred_check
    _
  $region19: #{net_forward.1} parent=0 // pred_check_branch
    %21 = sbr.rel (0) target = $region21
  $region20: #{net_forward.1} parent=0 // pred_region
    _
  $region21: #{net_forward.1} parent=0 // pred_fallthru
    _
  // Predicated region
  $region22: #{net_forward.1} parent=0 // pred_check
    _
  $region23: #{net_forward.1} parent=0 // pred_check_branch
    %23 = sbr.rel (0) target = $region25
  $region24: #{net_forward.1} parent=0 // pred_region
    _
  $region25: #{net_forward.1} parent=0 // pred_fallthru
    _
  // Predicated region
  $region26: #{net_forward.1} parent=0 // pred_check
    _
  $region27: #{net_forward.1} parent=0 // pred_check_branch
    %25 = sbr.rel (0) target = $region29
  $region28: #{net_forward.1} parent=0 // pred_region
    _
  $region29: #{net_forward.1} parent=0 // pred_fallthru
    _
  %v27 = vld [vmem:[%s0] sm:$0xff]
  %v28 = vld [vmem:[%s0 + $0x8] sm:$0xff]
  %v29 = vld [vmem:[%s0 + $0x10] sm:$0xff]
  %v30 = vld [vmem:[%s0 + $0x18] sm:$0xff]
  %v31 = vld [vmem:[%s0 + $0x20] sm:$0xff]
  %v32 = vld [vmem:[%s0 + $0x28] sm:$0xff]
  %v33 = vld [vmem:[%s1] sm:$0xf]
  %v34 = vld [vmem:[%s1 + $0x4] sm:$0xf]
  %v35 = vld [vmem:[%s1 + $0x8] sm:$0xf]
  %v36 = vld [vmem:[%s1 + $0xc] sm:$0xf]
  %v37 = vld [vmem:[%s1 + $0x10] sm:$0xf]
  %v38 = vld [vmem:[%s1 + $0x14] sm:$0xf]
  %v39 = vld [vmem:[%s1 + $0x18] sm:$0xf]
  %v40 = vld [vmem:[%s1 + $0x1c] sm:$0xf]
  %v41 = vld [vmem:[%s1 + $0x20] sm:$0xf]
  %v42 = vld [vmem:[%s1 + $0x24] sm:$0xf]
  %v43 = vld [vmem:[%s1 + $0x28] sm:$0xf]
  %v44 = vld [vmem:[%s1 + $0x2c] sm:$0xf]
  %v45 = vld [vmem:[%s1 + $0x30] sm:$0xf]
  %v46 = vld [vmem:[%s1 + $0x34] sm:$0xf]
  %v47 = vld [vmem:[%s1 + $0x38] sm:$0xf]
  %v48 = vld [vmem:[%s1 + $0x3c] sm:$0xf]
  %v49 = vld [vmem:[%s1 + $0x40] sm:$0xf]
  %v50 = vld [vmem:[%s1 + $0x44] sm:$0xf]
  %v51 = vld [vmem:[%s1 + $0x48] sm:$0xf]
  %v52 = vld [vmem:[%s1 + $0x4c] sm:$0xf]
  %v53 = vld [vmem:[%s1 + $0x50] sm:$0xf]
  %v54 = vld [vmem:[%s1 + $0x54] sm:$0xf]
  %v55 = vld [vmem:[%s1 + $0x58] sm:$0xf]
  %v56 = vld [vmem:[%s1 + $0x5c] sm:$0xf]
  %v57 = vld [vmem:[%s1 + $0x60] sm:$0xf]
  %v58 = vld [vmem:[%s1 + $0x64] sm:$0xf]
  %v59 = vld [vmem:[%s1 + $0x68] sm:$0xf]
  %v60 = vld [vmem:[%s1 + $0x6c] sm:$0xf]
  %v61 = vld [vmem:[%s1 + $0x70] sm:$0xf]
  %v62 = vld [vmem:[%s1 + $0x74] sm:$0xf]
  %v63 = vld [vmem:[%s1 + $0x78] sm:$0xf]
  %v64 = vld [vmem:[%s1 + $0x7c] sm:$0xf]
  %v65 = vld [vmem:[%s1 + $0x80] sm:$0xf]
  %v66 = vld [vmem:[%s1 + $0x84] sm:$0xf]
  %v67 = vld [vmem:[%s1 + $0x88] sm:$0xf]
  %v68 = vld [vmem:[%s1 + $0x8c] sm:$0xf]
  %v69 = vld [vmem:[%s1 + $0x90] sm:$0xf]
  %v70 = vld [vmem:[%s1 + $0x94] sm:$0xf]
  %v71 = vld [vmem:[%s1 + $0x98] sm:$0xf]
  %v72 = vld [vmem:[%s1 + $0x9c] sm:$0xf]
  %v73 = vld [vmem:[%s1 + $0xa0] sm:$0xf]
  %v74 = vld [vmem:[%s1 + $0xa4] sm:$0xf]
  %v75 = vld [vmem:[%s1 + $0xa8] sm:$0xf]
  %v76 = vld [vmem:[%s1 + $0xac] sm:$0xf]
  %v77 = vld [vmem:[%s1 + $0xb0] sm:$0xf]
  %v78 = vld [vmem:[%s1 + $0xb4] sm:$0xf]
  %v79 = vld [vmem:[%s1 + $0xb8] sm:$0xf]
  %v80 = vld [vmem:[%s1 + $0xbc] sm:$0xf]
  %v81 = vld [vmem:[%s1 + $0xc0] sm:$0xf]
  %v82 = vld [vmem:[%s1 + $0xc4] sm:$0xf]
  %v83 = vld [vmem:[%s1 + $0xc8] sm:$0xf]
  %v84 = vld [vmem:[%s1 + $0xcc] sm:$0xf]
  %v85 = vld [vmem:[%s1 + $0xd0] sm:$0xf]
  %v86 = vld [vmem:[%s1 + $0xd4] sm:$0xf]
  %v87 = vld [vmem:[%s1 + $0xd8] sm:$0xf]
  %v88 = vld [vmem:[%s1 + $0xdc] sm:$0xf]
  %v89 = vld [vmem:[%s1 + $0xe0] sm:$0xf]
  %v90 = vld [vmem:[%s1 + $0xe4] sm:$0xf]
  %v91 = vld [vmem:[%s1 + $0xe8] sm:$0xf]
  %v92 = vld [vmem:[%s1 + $0xec] sm:$0xf]
  %v93 = vld [vmem:[%s1 + $0xf0] sm:$0xf]
  %v94 = vld [vmem:[%s1 + $0xf4] sm:$0xf]
  %v95 = vld [vmem:[%s1 + $0xf8] sm:$0xf]
  %v96 = vld [vmem:[%s1 + $0xfc] sm:$0xf]
  %v97 = vld [vmem:[%s1 + $0x100] sm:$0xf]
  %v98 = vld [vmem:[%s1 + $0x104] sm:$0xf]
  %v99 = vld [vmem:[%s1 + $0x108] sm:$0xf]
  %v100 = vld [vmem:[%s1 + $0x10c] sm:$0xf]
  %v101 = vld [vmem:[%s1 + $0x110] sm:$0xf]
  %v102 = vld [vmem:[%s1 + $0x114] sm:$0xf]
  %v103 = vld [vmem:[%s1 + $0x118] sm:$0xf]
  %v104 = vld [vmem:[%s1 + $0x11c] sm:$0xf]
  %v105 = vld [vmem:[%s1 + $0x120] sm:$0xf]
  %v106 = vld [vmem:[%s1 + $0x124] sm:$0xf]
  %v107 = vld [vmem:[%s1 + $0x128] sm:$0xf]
  %v108 = vld [vmem:[%s1 + $0x12c] sm:$0xf]
  %v109 = vld [vmem:[%s1 + $0x130] sm:$0xf]
  %v110 = vld [vmem:[%s1 + $0x134] sm:$0xf]
  %v111 = vld [vmem:[%s1 + $0x138] sm:$0xf]
  %v112 = vld [vmem:[%s1 + $0x13c] sm:$0xf]
  %v113 = vld [vmem:[%s1 + $0x140] sm:$0xf]
  %v114 = vld [vmem:[%s1 + $0x144] sm:$0xf]
  %v115 = vld [vmem:[%s1 + $0x148] sm:$0xf]
  %v116 = vld [vmem:[%s1 + $0x14c] sm:$0xf]
  %v117 = vld [vmem:[%s1 + $0x150] sm:$0xf]
  %v118 = vld [vmem:[%s1 + $0x154] sm:$0xf]
  %v119 = vld [vmem:[%s1 + $0x158] sm:$0xf]
  %v120 = vld [vmem:[%s1 + $0x15c] sm:$0xf]
  %v121 = vld [vmem:[%s1 + $0x160] sm:$0xf]
  %v122 = vld [vmem:[%s1 + $0x164] sm:$0xf]
  %v123 = vld [vmem:[%s1 + $0x168] sm:$0xf]
  %v124 = vld [vmem:[%s1 + $0x16c] sm:$0xf]
  %v125 = vld [vmem:[%s1 + $0x170] sm:$0xf]
  %v126 = vld [vmem:[%s1 + $0x174] sm:$0xf]
  %v127 = vld [vmem:[%s1 + $0x178] sm:$0xf]
  %v128 = vld [vmem:[%s1 + $0x17c] sm:$0xf]
  %v129 = vld [vmem:[%s1 + $0x180] sm:$0xf]
  %v130 = vld [vmem:[%s1 + $0x184] sm:$0xf]
  %v131 = vld [vmem:[%s1 + $0x188] sm:$0xf]
  %v132 = vld [vmem:[%s1 + $0x18c] sm:$0xf]
  %v133 = vld [vmem:[%s1 + $0x190] sm:$0xf]
  %v134 = vld [vmem:[%s1 + $0x194] sm:$0xf]
  %v135 = vld [vmem:[%s1 + $0x198] sm:$0xf]
  %v136 = vld [vmem:[%s1 + $0x19c] sm:$0xf]
  %v137 = vld [vmem:[%s1 + $0x1a0] sm:$0xf]
  %v138 = vld [vmem:[%s1 + $0x1a4] sm:$0xf]
  %v139 = vld [vmem:[%s1 + $0x1a8] sm:$0xf]
  %v140 = vld [vmem:[%s1 + $0x1ac] sm:$0xf]
  %v141 = vld [vmem:[%s1 + $0x1b0] sm:$0xf]
  %v142 = vld [vmem:[%s1 + $0x1b4] sm:$0xf]
  %v143 = vld [vmem:[%s1 + $0x1b8] sm:$0xf]
  %v144 = vld [vmem:[%s1 + $0x1bc] sm:$0xf]
  %v145 = vld [vmem:[%s1 + $0x1c0] sm:$0xf]
  %v146 = vld [vmem:[%s1 + $0x1c4] sm:$0xf]
  %v147 = vld [vmem:[%s1 + $0x1c8] sm:$0xf]
  %v148 = vld [vmem:[%s1 + $0x1cc] sm:$0xf]
  %v149 = vld [vmem:[%s1 + $0x1d0] sm:$0xf]
  %v150 = vld [vmem:[%s1 + $0x1d4] sm:$0xf]
  %v151 = vld [vmem:[%s1 + $0x1d8] sm:$0xf]
  %v152 = vld [vmem:[%s1 + $0x1dc] sm:$0xf]
  %v153 = vld [vmem:[%s1 + $0x1e0] sm:$0xf]
  %v154 = vld [vmem:[%s1 + $0x1e4] sm:$0xf]
  %v155 = vld [vmem:[%s1 + $0x1e8] sm:$0xf]
  %v156 = vld [vmem:[%s1 + $0x1ec] sm:$0xf]
  %v157 = vld [vmem:[%s1 + $0x1f0] sm:$0xf]
  %v158 = vld [vmem:[%s1 + $0x1f4] sm:$0xf]
  %v159 = vld [vmem:[%s1 + $0x1f8] sm:$0xf]
  %v160 = vld [vmem:[%s1 + $0x1fc] sm:$0xf]
  %v161 = vld [vmem:[%s1 + $0x200] sm:$0xf]
  %v162 = vld [vmem:[%s1 + $0x204] sm:$0xf]
  %v163 = vld [vmem:[%s1 + $0x208] sm:$0xf]
  %v164 = vld [vmem:[%s1 + $0x20c] sm:$0xf]
  %v165 = vld [vmem:[%s1 + $0x210] sm:$0xf]
  %v166 = vld [vmem:[%s1 + $0x214] sm:$0xf]
  %v167 = vld [vmem:[%s1 + $0x218] sm:$0xf]
  %v168 = vld [vmem:[%s1 + $0x21c] sm:$0xf]
  %v169 = vld [vmem:[%s1 + $0x220] sm:$0xf]
  %v170 = vld [vmem:[%s1 + $0x224] sm:$0xf]
  %v171 = vld [vmem:[%s1 + $0x228] sm:$0xf]
  %v172 = vld [vmem:[%s1 + $0x22c] sm:$0xf]
  %v173 = vld [vmem:[%s1 + $0x230] sm:$0xf]
  %v174 = vld [vmem:[%s1 + $0x234] sm:$0xf]
  %v175 = vld [vmem:[%s1 + $0x238] sm:$0xf]
  %v176 = vld [vmem:[%s1 + $0x23c] sm:$0xf]
  %v177 = vld [vmem:[%s1 + $0x240] sm:$0xf]
  %v178 = vld [vmem:[%s1 + $0x244] sm:$0xf]
  %v179 = vld [vmem:[%s1 + $0x248] sm:$0xf]
  %v180 = vld [vmem:[%s1 + $0x24c] sm:$0xf]
  %v181 = vld [vmem:[%s1 + $0x250] sm:$0xf]
  %v182 = vld [vmem:[%s1 + $0x254] sm:$0xf]
  %v183 = vld [vmem:[%s1 + $0x258] sm:$0xf]
  %v184 = vld [vmem:[%s1 + $0x25c] sm:$0xf]
  %v185 = vld [vmem:[%s1 + $0x260] sm:$0xf]
  %v186 = vld [vmem:[%s1 + $0x264] sm:$0xf]
  %v187 = vld [vmem:[%s1 + $0x268] sm:$0xf]
  %v188 = vld [vmem:[%s1 + $0x26c] sm:$0xf]
  %v189 = vld [vmem:[%s1 + $0x270] sm:$0xf]
  %v190 = vld [vmem:[%s1 + $0x274] sm:$0xf]
  %v191 = vld [vmem:[%s1 + $0x278] sm:$0xf]
  %v192 = vld [vmem:[%s1 + $0x27c] sm:$0xf]
  %v193 = vld [vmem:[%s1 + $0x280] sm:$0xf]
  %v194 = vld [vmem:[%s1 + $0x284] sm:$0xf]
  %v195 = vld [vmem:[%s1 + $0x288] sm:$0xf]
  %v196 = vld [vmem:[%s1 + $0x28c] sm:$0xf]
  %v197 = vld [vmem:[%s1 + $0x290] sm:$0xf]
  %v198 = vld [vmem:[%s1 + $0x294] sm:$0xf]
  %v199 = vld [vmem:[%s1 + $0x298] sm:$0xf]
  %v200 = vld [vmem:[%s1 + $0x29c] sm:$0xf]
  %v201 = vld [vmem:[%s1 + $0x2a0] sm:$0xf]
  %v202 = vld [vmem:[%s1 + $0x2a4] sm:$0xf]
  %v203 = vld [vmem:[%s1 + $0x2a8] sm:$0xf]
  %v204 = vld [vmem:[%s1 + $0x2ac] sm:$0xf]
  %v205 = vld [vmem:[%s1 + $0x2b0] sm:$0xf]
  %v206 = vld [vmem:[%s1 + $0x2b4] sm:$0xf]
  %v207 = vld [vmem:[%s1 + $0x2b8] sm:$0xf]
  %v208 = vld [vmem:[%s1 + $0x2bc] sm:$0xf]
  %v209 = vld [vmem:[%s1 + $0x2c0] sm:$0xf]
  %v210 = vld [vmem:[%s1 + $0x2c4] sm:$0xf]
  %v211 = vld [vmem:[%s1 + $0x2c8] sm:$0xf]
  %v212 = vld [vmem:[%s1 + $0x2cc] sm:$0xf]
  %v213 = vld [vmem:[%s1 + $0x2d0] sm:$0xf]
  %v214 = vld [vmem:[%s1 + $0x2d4] sm:$0xf]
  %v215 = vld [vmem:[%s1 + $0x2d8] sm:$0xf]
  %v216 = vld [vmem:[%s1 + $0x2dc] sm:$0xf]
  %v217 = vld [vmem:[%s1 + $0x2e0] sm:$0xf]
  %v218 = vld [vmem:[%s1 + $0x2e4] sm:$0xf]
  %v219 = vld [vmem:[%s1 + $0x2e8] sm:$0xf]
  %v220 = vld [vmem:[%s1 + $0x2ec] sm:$0xf]
  %v221 = vld [vmem:[%s1 + $0x2f0] sm:$0xf]
  %v222 = vld [vmem:[%s1 + $0x2f4] sm:$0xf]
  %v223 = vld [vmem:[%s1 + $0x2f8] sm:$0xf]
  %v224 = vld [vmem:[%s1 + $0x2fc] sm:$0xf]
  %v225 = vld [vmem:[%s2] sm:$0x1]
  %v227 = vlaneseq
  %v228 = vshrl.u32 %v227, 7
  %v229 = vsub.s32 0, %v228
  %v230 = vrot.slane %v225, %v229
  %v238 = vunpack.c.l.b16 %v27
  %v239 = vunpack.c.h.b16 %v27
  %v240 = vunpack.c.l.b16 %v28
  %v241 = vunpack.c.h.b16 %v28
  %v242 = vunpack.c.l.b16 %v29
  %v243 = vunpack.c.h.b16 %v29
  %v244 = vunpack.c.l.b16 %v30
  %v245 = vunpack.c.h.b16 %v30
  %v246 = vunpack.c.l.b16 %v31
  %v247 = vunpack.c.h.b16 %v31
  %v248 = vunpack.c.l.b16 %v32
  %v249 = vunpack.c.h.b16 %v32
  %v250 = vpack.c.b16 %v238, %v238
  %v251 = vpack.c.b16 %v239, %v239
  %v252 = vpack.c.b16 %v240, %v240
  %v253 = vpack.c.b16 %v241, %v241
  %v254 = vpack.c.b16 %v242, %v242
  %v255 = vpack.c.b16 %v243, %v243
  %v256 = vpack.c.b16 %v244, %v244
  %v257 = vpack.c.b16 %v245, %v245
  %v258 = vpack.c.b16 %v246, %v246
  %v259 = vpack.c.b16 %v247, %v247
  %v260 = vpack.c.b16 %v248, %v248
  %v261 = vpack.c.b16 %v249, %v249
  %v466 = vunpack.c.l.b16 %v33
  %v467 = vunpack.c.l.b16 %v34
  %v468 = vunpack.c.l.b16 %v35
  %v469 = vunpack.c.l.b16 %v36
  %v470 = vunpack.c.l.b16 %v37
  %v471 = vunpack.c.l.b16 %v38
  %v472 = vunpack.c.l.b16 %v39
  %v473 = vunpack.c.l.b16 %v40
  %v474 = vunpack.c.l.b16 %v41
  %v475 = vunpack.c.l.b16 %v42
  %v476 = vunpack.c.l.b16 %v43
  %v477 = vunpack.c.l.b16 %v44
  %v478 = vunpack.c.l.b16 %v45
  %v479 = vunpack.c.l.b16 %v46
  %v480 = vunpack.c.l.b16 %v47
  %v481 = vunpack.c.l.b16 %v48
  %v482 = vunpack.c.l.b16 %v49
  %v483 = vunpack.c.l.b16 %v50
  %v484 = vunpack.c.l.b16 %v51
  %v485 = vunpack.c.l.b16 %v52
  %v486 = vunpack.c.l.b16 %v53
  %v487 = vunpack.c.l.b16 %v54
  %v488 = vunpack.c.l.b16 %v55
  %v489 = vunpack.c.l.b16 %v56
  %v490 = vunpack.c.l.b16 %v57
  %v491 = vunpack.c.l.b16 %v58
  %v492 = vunpack.c.l.b16 %v59
  %v493 = vunpack.c.l.b16 %v60
  %v494 = vunpack.c.l.b16 %v61
  %v495 = vunpack.c.l.b16 %v62
  %v496 = vunpack.c.l.b16 %v63
  %v497 = vunpack.c.l.b16 %v64
  %v498 = vunpack.c.l.b16 %v65
  %v499 = vunpack.c.l.b16 %v66
  %v500 = vunpack.c.l.b16 %v67
  %v501 = vunpack.c.l.b16 %v68
  %v502 = vunpack.c.l.b16 %v69
  %v503 = vunpack.c.l.b16 %v70
  %v504 = vunpack.c.l.b16 %v71
  %v505 = vunpack.c.l.b16 %v72
  %v506 = vunpack.c.l.b16 %v73
  %v507 = vunpack.c.l.b16 %v74
  %v508 = vunpack.c.l.b16 %v75
  %v509 = vunpack.c.l.b16 %v76
  %v510 = vunpack.c.l.b16 %v77
  %v511 = vunpack.c.l.b16 %v78
  %v512 = vunpack.c.l.b16 %v79
  %v513 = vunpack.c.l.b16 %v80
  %v514 = vunpack.c.l.b16 %v81
  %v515 = vunpack.c.l.b16 %v82
  %v516 = vunpack.c.l.b16 %v83
  %v517 = vunpack.c.l.b16 %v84
  %v518 = vunpack.c.l.b16 %v85
  %v519 = vunpack.c.l.b16 %v86
  %v520 = vunpack.c.l.b16 %v87
  %v521 = vunpack.c.l.b16 %v88
  %v522 = vunpack.c.l.b16 %v89
  %v523 = vunpack.c.l.b16 %v90
  %v524 = vunpack.c.l.b16 %v91
  %v525 = vunpack.c.l.b16 %v92
  %v526 = vunpack.c.l.b16 %v93
  %v527 = vunpack.c.l.b16 %v94
  %v528 = vunpack.c.l.b16 %v95
  %v529 = vunpack.c.l.b16 %v96
  %v530 = vunpack.c.l.b16 %v97
  %v531 = vunpack.c.l.b16 %v98
  %v532 = vunpack.c.l.b16 %v99
  %v533 = vunpack.c.l.b16 %v100
  %v534 = vunpack.c.l.b16 %v101
  %v535 = vunpack.c.l.b16 %v102
  %v536 = vunpack.c.l.b16 %v103
  %v537 = vunpack.c.l.b16 %v104
  %v538 = vunpack.c.l.b16 %v105
  %v539 = vunpack.c.l.b16 %v106
  %v540 = vunpack.c.l.b16 %v107
  %v541 = vunpack.c.l.b16 %v108
  %v542 = vunpack.c.l.b16 %v109
  %v543 = vunpack.c.l.b16 %v110
  %v544 = vunpack.c.l.b16 %v111
  %v545 = vunpack.c.l.b16 %v112
  %v546 = vunpack.c.l.b16 %v113
  %v547 = vunpack.c.l.b16 %v114
  %v548 = vunpack.c.l.b16 %v115
  %v549 = vunpack.c.l.b16 %v116
  %v550 = vunpack.c.l.b16 %v117
  %v551 = vunpack.c.l.b16 %v118
  %v552 = vunpack.c.l.b16 %v119
  %v553 = vunpack.c.l.b16 %v120
  %v554 = vunpack.c.l.b16 %v121
  %v555 = vunpack.c.l.b16 %v122
  %v556 = vunpack.c.l.b16 %v123
  %v557 = vunpack.c.l.b16 %v124
  %v558 = vunpack.c.l.b16 %v125
  %v559 = vunpack.c.l.b16 %v126
  %v560 = vunpack.c.l.b16 %v127
  %v561 = vunpack.c.l.b16 %v128
  %v562 = vunpack.c.l.b16 %v129
  %v563 = vunpack.c.l.b16 %v130
  %v564 = vunpack.c.l.b16 %v131
  %v565 = vunpack.c.l.b16 %v132
  %v566 = vunpack.c.l.b16 %v133
  %v567 = vunpack.c.l.b16 %v134
  %v568 = vunpack.c.l.b16 %v135
  %v569 = vunpack.c.l.b16 %v136
  %v570 = vunpack.c.l.b16 %v137
  %v571 = vunpack.c.l.b16 %v138
  %v572 = vunpack.c.l.b16 %v139
  %v573 = vunpack.c.l.b16 %v140
  %v574 = vunpack.c.l.b16 %v141
  %v575 = vunpack.c.l.b16 %v142
  %v576 = vunpack.c.l.b16 %v143
  %v577 = vunpack.c.l.b16 %v144
  %v578 = vunpack.c.l.b16 %v145
  %v579 = vunpack.c.l.b16 %v146
  %v580 = vunpack.c.l.b16 %v147
  %v581 = vunpack.c.l.b16 %v148
  %v582 = vunpack.c.l.b16 %v149
  %v583 = vunpack.c.l.b16 %v150
  %v584 = vunpack.c.l.b16 %v151
  %v585 = vunpack.c.l.b16 %v152
  %v586 = vunpack.c.l.b16 %v153
  %v587 = vunpack.c.l.b16 %v154
  %v588 = vunpack.c.l.b16 %v155
  %v589 = vunpack.c.l.b16 %v156
  %v590 = vunpack.c.l.b16 %v157
  %v591 = vunpack.c.l.b16 %v158
  %v592 = vunpack.c.l.b16 %v159
  %v593 = vunpack.c.l.b16 %v160
  %v594 = vunpack.c.l.b16 %v161
  %v595 = vunpack.c.l.b16 %v162
  %v596 = vunpack.c.l.b16 %v163
  %v597 = vunpack.c.l.b16 %v164
  %v598 = vunpack.c.l.b16 %v165
  %v599 = vunpack.c.l.b16 %v166
  %v600 = vunpack.c.l.b16 %v167
  %v601 = vunpack.c.l.b16 %v168
  %v602 = vunpack.c.l.b16 %v169
  %v603 = vunpack.c.l.b16 %v170
  %v604 = vunpack.c.l.b16 %v171
  %v605 = vunpack.c.l.b16 %v172
  %v606 = vunpack.c.l.b16 %v173
  %v607 = vunpack.c.l.b16 %v174
  %v608 = vunpack.c.l.b16 %v175
  %v609 = vunpack.c.l.b16 %v176
  %v610 = vunpack.c.l.b16 %v177
  %v611 = vunpack.c.l.b16 %v178
  %v612 = vunpack.c.l.b16 %v179
  %v613 = vunpack.c.l.b16 %v180
  %v614 = vunpack.c.l.b16 %v181
  %v615 = vunpack.c.l.b16 %v182
  %v616 = vunpack.c.l.b16 %v183
  %v617 = vunpack.c.l.b16 %v184
  %v618 = vunpack.c.l.b16 %v185
  %v619 = vunpack.c.l.b16 %v186
  %v620 = vunpack.c.l.b16 %v187
  %v621 = vunpack.c.l.b16 %v188
  %v622 = vunpack.c.l.b16 %v189
  %v623 = vunpack.c.l.b16 %v190
  %v624 = vunpack.c.l.b16 %v191
  %v625 = vunpack.c.l.b16 %v192
  %v626 = vunpack.c.l.b16 %v193
  %v627 = vunpack.c.l.b16 %v194
  %v628 = vunpack.c.l.b16 %v195
  %v629 = vunpack.c.l.b16 %v196
  %v630 = vunpack.c.l.b16 %v197
  %v631 = vunpack.c.l.b16 %v198
  %v632 = vunpack.c.l.b16 %v199
  %v633 = vunpack.c.l.b16 %v200
  %v634 = vunpack.c.l.b16 %v201
  %v635 = vunpack.c.l.b16 %v202
  %v636 = vunpack.c.l.b16 %v203
  %v637 = vunpack.c.l.b16 %v204
  %v638 = vunpack.c.l.b16 %v205
  %v639 = vunpack.c.l.b16 %v206
  %v640 = vunpack.c.l.b16 %v207
  %v641 = vunpack.c.l.b16 %v208
  %v642 = vunpack.c.l.b16 %v209
  %v643 = vunpack.c.l.b16 %v210
  %v644 = vunpack.c.l.b16 %v211
  %v645 = vunpack.c.l.b16 %v212
  %v646 = vunpack.c.l.b16 %v213
  %v647 = vunpack.c.l.b16 %v214
  %v648 = vunpack.c.l.b16 %v215
  %v649 = vunpack.c.l.b16 %v216
  %v650 = vunpack.c.l.b16 %v217
  %v651 = vunpack.c.l.b16 %v218
  %v652 = vunpack.c.l.b16 %v219
  %v653 = vunpack.c.l.b16 %v220
  %v654 = vunpack.c.l.b16 %v221
  %v655 = vunpack.c.l.b16 %v222
  %v656 = vunpack.c.l.b16 %v223
  %v657 = vunpack.c.l.b16 %v224
  %v658 = vpack.c.b16 %v467, %v466
  %v659 = vpack.c.b16 %v469, %v468
  %v660 = vpack.c.b16 %v471, %v470
  %v661 = vpack.c.b16 %v473, %v472
  %v662 = vpack.c.b16 %v475, %v474
  %v663 = vpack.c.b16 %v477, %v476
  %v664 = vpack.c.b16 %v479, %v478
  %v665 = vpack.c.b16 %v481, %v480
  %v666 = vpack.c.b16 %v483, %v482
  %v667 = vpack.c.b16 %v485, %v484
  %v668 = vpack.c.b16 %v487, %v486
  %v669 = vpack.c.b16 %v489, %v488
  %v670 = vpack.c.b16 %v491, %v490
  %v671 = vpack.c.b16 %v493, %v492
  %v672 = vpack.c.b16 %v495, %v494
  %v673 = vpack.c.b16 %v497, %v496
  %v674 = vpack.c.b16 %v499, %v498
  %v675 = vpack.c.b16 %v501, %v500
  %v676 = vpack.c.b16 %v503, %v502
  %v677 = vpack.c.b16 %v505, %v504
  %v678 = vpack.c.b16 %v507, %v506
  %v679 = vpack.c.b16 %v509, %v508
  %v680 = vpack.c.b16 %v511, %v510
  %v681 = vpack.c.b16 %v513, %v512
  %v682 = vpack.c.b16 %v515, %v514
  %v683 = vpack.c.b16 %v517, %v516
  %v684 = vpack.c.b16 %v519, %v518
  %v685 = vpack.c.b16 %v521, %v520
  %v686 = vpack.c.b16 %v523, %v522
  %v687 = vpack.c.b16 %v525, %v524
  %v688 = vpack.c.b16 %v527, %v526
  %v689 = vpack.c.b16 %v529, %v528
  %v690 = vpack.c.b16 %v531, %v530
  %v691 = vpack.c.b16 %v533, %v532
  %v692 = vpack.c.b16 %v535, %v534
  %v693 = vpack.c.b16 %v537, %v536
  %v694 = vpack.c.b16 %v539, %v538
  %v695 = vpack.c.b16 %v541, %v540
  %v696 = vpack.c.b16 %v543, %v542
  %v697 = vpack.c.b16 %v545, %v544
  %v698 = vpack.c.b16 %v547, %v546
  %v699 = vpack.c.b16 %v549, %v548
  %v700 = vpack.c.b16 %v551, %v550
  %v701 = vpack.c.b16 %v553, %v552
  %v702 = vpack.c.b16 %v555, %v554
  %v703 = vpack.c.b16 %v557, %v556
  %v704 = vpack.c.b16 %v559, %v558
  %v705 = vpack.c.b16 %v561, %v560
  %v706 = vpack.c.b16 %v563, %v562
  %v707 = vpack.c.b16 %v565, %v564
  %v708 = vpack.c.b16 %v567, %v566
  %v709 = vpack.c.b16 %v569, %v568
  %v710 = vpack.c.b16 %v571, %v570
  %v711 = vpack.c.b16 %v573, %v572
  %v712 = vpack.c.b16 %v575, %v574
  %v713 = vpack.c.b16 %v577, %v576
  %v714 = vpack.c.b16 %v579, %v578
  %v715 = vpack.c.b16 %v581, %v580
  %v716 = vpack.c.b16 %v583, %v582
  %v717 = vpack.c.b16 %v585, %v584
  %v718 = vpack.c.b16 %v587, %v586
  %v719 = vpack.c.b16 %v589, %v588
  %v720 = vpack.c.b16 %v591, %v590
  %v721 = vpack.c.b16 %v593, %v592
  %v722 = vpack.c.b16 %v595, %v594
  %v723 = vpack.c.b16 %v597, %v596
  %v724 = vpack.c.b16 %v599, %v598
  %v725 = vpack.c.b16 %v601, %v600
  %v726 = vpack.c.b16 %v603, %v602
  %v727 = vpack.c.b16 %v605, %v604
  %v728 = vpack.c.b16 %v607, %v606
  %v729 = vpack.c.b16 %v609, %v608
  %v730 = vpack.c.b16 %v611, %v610
  %v731 = vpack.c.b16 %v613, %v612
  %v732 = vpack.c.b16 %v615, %v614
  %v733 = vpack.c.b16 %v617, %v616
  %v734 = vpack.c.b16 %v619, %v618
  %v735 = vpack.c.b16 %v621, %v620
  %v736 = vpack.c.b16 %v623, %v622
  %v737 = vpack.c.b16 %v625, %v624
  %v738 = vpack.c.b16 %v627, %v626
  %v739 = vpack.c.b16 %v629, %v628
  %v740 = vpack.c.b16 %v631, %v630
  %v741 = vpack.c.b16 %v633, %v632
  %v742 = vpack.c.b16 %v635, %v634
  %v743 = vpack.c.b16 %v637, %v636
  %v744 = vpack.c.b16 %v639, %v638
  %v745 = vpack.c.b16 %v641, %v640
  %v746 = vpack.c.b16 %v643, %v642
  %v747 = vpack.c.b16 %v645, %v644
  %v748 = vpack.c.b16 %v647, %v646
  %v749 = vpack.c.b16 %v649, %v648
  %v750 = vpack.c.b16 %v651, %v650
  %v751 = vpack.c.b16 %v653, %v652
  %v752 = vpack.c.b16 %v655, %v654
  %v753 = vpack.c.b16 %v657, %v656
  %850 = vmatprep.subr.bf16.mxu0 0
  %851 = vmatpush1.bf16.msra.mxu0 %v658
  %852 = vmatprep.subr.bf16.mxu0 0
  %853 = vmatpush1.bf16.msra.mxu0 %v659
  %854 = vmatprep.subr.bf16.mxu0 0
  %855 = vmatpush1.bf16.msra.mxu0 %v660
  %856 = vmatprep.subr.bf16.mxu0 0
  %857 = vmatpush1.bf16.msra.mxu0 %v661
  %858 = vmatprep.subr.bf16.mxu0 0
  %859 = vmatpush1.bf16.msra.mxu0 %v662
  %860 = vmatprep.subr.bf16.mxu0 0
  %861 = vmatpush1.bf16.msra.mxu0 %v663
  %862 = vmatprep.subr.bf16.mxu0 0
  %863 = vmatpush1.bf16.msra.mxu0 %v664
  %864 = vmatprep.subr.bf16.mxu0 0
  %865 = vmatpush1.bf16.msra.mxu0 %v665
  %866 = vmatprep.subr.bf16.mxu0 0
  %867 = vmatpush1.bf16.msra.mxu0 %v666
  %868 = vmatprep.subr.bf16.mxu0 0
  %869 = vmatpush1.bf16.msra.mxu0 %v667
  %870 = vmatprep.subr.bf16.mxu0 0
  %871 = vmatpush1.bf16.msra.mxu0 %v668
  %872 = vmatprep.subr.bf16.mxu0 0
  %873 = vmatpush1.bf16.msra.mxu0 %v669
  %874 = vmatprep.subr.bf16.mxu0 0
  %875 = vmatpush1.bf16.msra.mxu0 %v670
  %876 = vmatprep.subr.bf16.mxu0 0
  %877 = vmatpush1.bf16.msra.mxu0 %v671
  %878 = vmatprep.subr.bf16.mxu0 0
  %879 = vmatpush1.bf16.msra.mxu0 %v672
  %880 = vmatprep.subr.bf16.mxu0 0
  %881 = vmatpush1.bf16.msra.mxu0 %v673
  %882 = vmatprep.mubr.bf16.mxu0 %v251
  %883 = vmatmul.mubr.bf16.gmra.mrb[0].mxu0 %v250
  %v884 = vpop.f32.mrb[0].mxu0
  %v885 = vadd.f32 %v230, %v884
  %v886 = vpop.f32.mrb[0].mxu0
  %v887 = vpop.f32.mrb[0].mxu0
  %v888 = vpop.f32.mrb[0].mxu0
  %889 = vdwg.mxu0
  %890 = vmatprep.subr.bf16.mxu0 0
  %891 = vmatpush1.bf16.msra.mxu0 %v674
  %892 = vmatprep.subr.bf16.mxu0 0
  %893 = vmatpush1.bf16.msra.mxu0 %v675
  %894 = vmatprep.subr.bf16.mxu0 0
  %895 = vmatpush1.bf16.msra.mxu0 %v676
  %896 = vmatprep.subr.bf16.mxu0 0
  %897 = vmatpush1.bf16.msra.mxu0 %v677
  %898 = vmatprep.subr.bf16.mxu0 0
  %899 = vmatpush1.bf16.msra.mxu0 %v678
  %900 = vmatprep.subr.bf16.mxu0 0
  %901 = vmatpush1.bf16.msra.mxu0 %v679
  %902 = vmatprep.subr.bf16.mxu0 0
  %903 = vmatpush1.bf16.msra.mxu0 %v680
  %904 = vmatprep.subr.bf16.mxu0 0
  %905 = vmatpush1.bf16.msra.mxu0 %v681
  %906 = vmatprep.subr.bf16.mxu0 0
  %907 = vmatpush1.bf16.msra.mxu0 %v682
  %908 = vmatprep.subr.bf16.mxu0 0
  %909 = vmatpush1.bf16.msra.mxu0 %v683
  %910 = vmatprep.subr.bf16.mxu0 0
  %911 = vmatpush1.bf16.msra.mxu0 %v684
  %912 = vmatprep.subr.bf16.mxu0 0
  %913 = vmatpush1.bf16.msra.mxu0 %v685
  %914 = vmatprep.subr.bf16.mxu0 0
  %915 = vmatpush1.bf16.msra.mxu0 %v686
  %916 = vmatprep.subr.bf16.mxu0 0
  %917 = vmatpush1.bf16.msra.mxu0 %v687
  %918 = vmatprep.subr.bf16.mxu0 0
  %919 = vmatpush1.bf16.msra.mxu0 %v688
  %920 = vmatprep.subr.bf16.mxu0 0
  %921 = vmatpush1.bf16.msra.mxu0 %v689
  %922 = vmatprep.mubr.bf16.mxu0 %v253
  %923 = vmatmul.mubr.bf16.gmra.mrb[0].mxu0 %v252
  %v924 = vpop.f32.mrb[0].mxu0
  %v925 = vadd.f32 %v885, %v924
  %v926 = vpop.f32.mrb[0].mxu0
  %v927 = vpop.f32.mrb[0].mxu0
  %v928 = vpop.f32.mrb[0].mxu0
  %929 = vdwg.mxu0
  %930 = vmatprep.subr.bf16.mxu0 0
  %931 = vmatpush1.bf16.msra.mxu0 %v690
  %932 = vmatprep.subr.bf16.mxu0 0
  %933 = vmatpush1.bf16.msra.mxu0 %v691
  %934 = vmatprep.subr.bf16.mxu0 0
  %935 = vmatpush1.bf16.msra.mxu0 %v692
  %936 = vmatprep.subr.bf16.mxu0 0
  %937 = vmatpush1.bf16.msra.mxu0 %v693
  %938 = vmatprep.subr.bf16.mxu0 0
  %939 = vmatpush1.bf16.msra.mxu0 %v694
  %940 = vmatprep.subr.bf16.mxu0 0
  %941 = vmatpush1.bf16.msra.mxu0 %v695
  %942 = vmatprep.subr.bf16.mxu0 0
  %943 = vmatpush1.bf16.msra.mxu0 %v696
  %944 = vmatprep.subr.bf16.mxu0 0
  %945 = vmatpush1.bf16.msra.mxu0 %v697
  %946 = vmatprep.subr.bf16.mxu0 0
  %947 = vmatpush1.bf16.msra.mxu0 %v698
  %948 = vmatprep.subr.bf16.mxu0 0
  %949 = vmatpush1.bf16.msra.mxu0 %v699
  %950 = vmatprep.subr.bf16.mxu0 0
  %951 = vmatpush1.bf16.msra.mxu0 %v700
  %952 = vmatprep.subr.bf16.mxu0 0
  %953 = vmatpush1.bf16.msra.mxu0 %v701
  %954 = vmatprep.subr.bf16.mxu0 0
  %955 = vmatpush1.bf16.msra.mxu0 %v702
  %956 = vmatprep.subr.bf16.mxu0 0
  %957 = vmatpush1.bf16.msra.mxu0 %v703
  %958 = vmatprep.subr.bf16.mxu0 0
  %959 = vmatpush1.bf16.msra.mxu0 %v704
  %960 = vmatprep.subr.bf16.mxu0 0
  %961 = vmatpush1.bf16.msra.mxu0 %v705
  %962 = vmatprep.mubr.bf16.mxu0 %v255
  %963 = vmatmul.mubr.bf16.gmra.mrb[0].mxu0 %v254
  %v964 = vpop.f32.mrb[0].mxu0
  %v965 = vadd.f32 %v925, %v964
  %v966 = vpop.f32.mrb[0].mxu0
  %v967 = vpop.f32.mrb[0].mxu0
  %v968 = vpop.f32.mrb[0].mxu0
  %969 = vdwg.mxu0
  %970 = vmatprep.subr.bf16.mxu0 0
  %971 = vmatpush1.bf16.msra.mxu0 %v706
  %972 = vmatprep.subr.bf16.mxu0 0
  %973 = vmatpush1.bf16.msra.mxu0 %v707
  %974 = vmatprep.subr.bf16.mxu0 0
  %975 = vmatpush1.bf16.msra.mxu0 %v708
  %976 = vmatprep.subr.bf16.mxu0 0
  %977 = vmatpush1.bf16.msra.mxu0 %v709
  %978 = vmatprep.subr.bf16.mxu0 0
  %979 = vmatpush1.bf16.msra.mxu0 %v710
  %980 = vmatprep.subr.bf16.mxu0 0
  %981 = vmatpush1.bf16.msra.mxu0 %v711
  %982 = vmatprep.subr.bf16.mxu0 0
  %983 = vmatpush1.bf16.msra.mxu0 %v712
  %984 = vmatprep.subr.bf16.mxu0 0
  %985 = vmatpush1.bf16.msra.mxu0 %v713
  %986 = vmatprep.subr.bf16.mxu0 0
  %987 = vmatpush1.bf16.msra.mxu0 %v714
  %988 = vmatprep.subr.bf16.mxu0 0
  %989 = vmatpush1.bf16.msra.mxu0 %v715
  %990 = vmatprep.subr.bf16.mxu0 0
  %991 = vmatpush1.bf16.msra.mxu0 %v716
  %992 = vmatprep.subr.bf16.mxu0 0
  %993 = vmatpush1.bf16.msra.mxu0 %v717
  %994 = vmatprep.subr.bf16.mxu0 0
  %995 = vmatpush1.bf16.msra.mxu0 %v718
  %996 = vmatprep.subr.bf16.mxu0 0
  %997 = vmatpush1.bf16.msra.mxu0 %v719
  %998 = vmatprep.subr.bf16.mxu0 0
  %999 = vmatpush1.bf16.msra.mxu0 %v720
  %1000 = vmatprep.subr.bf16.mxu0 0
  %1001 = vmatpush1.bf16.msra.mxu0 %v721
  %1002 = vmatprep.mubr.bf16.mxu0 %v257
  %1003 = vmatmul.mubr.bf16.gmra.mrb[0].mxu0 %v256
  %v1004 = vpop.f32.mrb[0].mxu0
  %v1005 = vadd.f32 %v965, %v1004
  %v1006 = vpop.f32.mrb[0].mxu0
  %v1007 = vpop.f32.mrb[0].mxu0
  %v1008 = vpop.f32.mrb[0].mxu0
  %1009 = vdwg.mxu0
  %1010 = vmatprep.subr.bf16.mxu0 0
  %1011 = vmatpush1.bf16.msra.mxu0 %v722
  %1012 = vmatprep.subr.bf16.mxu0 0
  %1013 = vmatpush1.bf16.msra.mxu0 %v723
  %1014 = vmatprep.subr.bf16.mxu0 0
  %1015 = vmatpush1.bf16.msra.mxu0 %v724
  %1016 = vmatprep.subr.bf16.mxu0 0
  %1017 = vmatpush1.bf16.msra.mxu0 %v725
  %1018 = vmatprep.subr.bf16.mxu0 0
  %1019 = vmatpush1.bf16.msra.mxu0 %v726
  %1020 = vmatprep.subr.bf16.mxu0 0
  %1021 = vmatpush1.bf16.msra.mxu0 %v727
  %1022 = vmatprep.subr.bf16.mxu0 0
  %1023 = vmatpush1.bf16.msra.mxu0 %v728
  %1024 = vmatprep.subr.bf16.mxu0 0
  %1025 = vmatpush1.bf16.msra.mxu0 %v729
  %1026 = vmatprep.subr.bf16.mxu0 0
  %1027 = vmatpush1.bf16.msra.mxu0 %v730
  %1028 = vmatprep.subr.bf16.mxu0 0
  %1029 = vmatpush1.bf16.msra.mxu0 %v731
  %1030 = vmatprep.subr.bf16.mxu0 0
  %1031 = vmatpush1.bf16.msra.mxu0 %v732
  %1032 = vmatprep.subr.bf16.mxu0 0
  %1033 = vmatpush1.bf16.msra.mxu0 %v733
  %1034 = vmatprep.subr.bf16.mxu0 0
  %1035 = vmatpush1.bf16.msra.mxu0 %v734
  %1036 = vmatprep.subr.bf16.mxu0 0
  %1037 = vmatpush1.bf16.msra.mxu0 %v735
  %1038 = vmatprep.subr.bf16.mxu0 0
  %1039 = vmatpush1.bf16.msra.mxu0 %v736
  %1040 = vmatprep.subr.bf16.mxu0 0
  %1041 = vmatpush1.bf16.msra.mxu0 %v737
  %1042 = vmatprep.mubr.bf16.mxu0 %v259
  %1043 = vmatmul.mubr.bf16.gmra.mrb[0].mxu0 %v258
  %v1044 = vpop.f32.mrb[0].mxu0
  %v1045 = vadd.f32 %v1005, %v1044
  %v1046 = vpop.f32.mrb[0].mxu0
  %v1047 = vpop.f32.mrb[0].mxu0
  %v1048 = vpop.f32.mrb[0].mxu0
  %1049 = vdwg.mxu0
  %1050 = vmatprep.subr.bf16.mxu0 0
  %1051 = vmatpush1.bf16.msra.mxu0 %v738
  %1052 = vmatprep.subr.bf16.mxu0 0
  %1053 = vmatpush1.bf16.msra.mxu0 %v739
  %1054 = vmatprep.subr.bf16.mxu0 0
  %1055 = vmatpush1.bf16.msra.mxu0 %v740
  %1056 = vmatprep.subr.bf16.mxu0 0
  %1057 = vmatpush1.bf16.msra.mxu0 %v741
  %1058 = vmatprep.subr.bf16.mxu0 0
  %1059 = vmatpush1.bf16.msra.mxu0 %v742
  %1060 = vmatprep.subr.bf16.mxu0 0
  %1061 = vmatpush1.bf16.msra.mxu0 %v743
  %1062 = vmatprep.subr.bf16.mxu0 0
  %1063 = vmatpush1.bf16.msra.mxu0 %v744
  %1064 = vmatprep.subr.bf16.mxu0 0
  %1065 = vmatpush1.bf16.msra.mxu0 %v745
  %1066 = vmatprep.subr.bf16.mxu0 0
  %1067 = vmatpush1.bf16.msra.mxu0 %v746
  %1068 = vmatprep.subr.bf16.mxu0 0
  %1069 = vmatpush1.bf16.msra.mxu0 %v747
  %1070 = vmatprep.subr.bf16.mxu0 0
  %1071 = vmatpush1.bf16.msra.mxu0 %v748
  %1072 = vmatprep.subr.bf16.mxu0 0
  %1073 = vmatpush1.bf16.msra.mxu0 %v749
  %1074 = vmatprep.subr.bf16.mxu0 0
  %1075 = vmatpush1.bf16.msra.mxu0 %v750
  %1076 = vmatprep.subr.bf16.mxu0 0
  %1077 = vmatpush1.bf16.msra.mxu0 %v751
  %1078 = vmatprep.subr.bf16.mxu0 0
  %1079 = vmatpush1.bf16.msra.mxu0 %v752
  %1080 = vmatprep.subr.bf16.mxu0 0
  %1081 = vmatpush1.bf16.msra.mxu0 %v753
  %1082 = vmatprep.mubr.bf16.mxu0 %v261
  %1083 = vmatmul.mubr.bf16.gmra.mrb[0].mxu0 %v260
  %v1084 = vpop.f32.mrb[0].mxu0
  %v1085 = vadd.f32 %v1045, %v1084
  %v1086 = vpop.f32.mrb[0].mxu0
  %v1087 = vpop.f32.mrb[0].mxu0
  %v1088 = vpop.f32.mrb[0].mxu0
  %1089 = vdwg.mxu0
  %v1090 = vmax.f32 %v1085, 0.0
  %v1091 = vpack.c.bf16 %v1090, %v1090
  %v1092 = vld [vmem:[%s3] sm:$0xf]
  %v1093 = vld [vmem:[%s3 + $0x4] sm:$0xf]
  %v1094 = vld [vmem:[%s3 + $0x8] sm:$0xf]
  %v1095 = vld [vmem:[%s3 + $0xc] sm:$0xf]
  %v1096 = vld [vmem:[%s3 + $0x10] sm:$0xf]
  %v1097 = vld [vmem:[%s3 + $0x14] sm:$0xf]
  %v1098 = vld [vmem:[%s3 + $0x18] sm:$0xf]
  %v1099 = vld [vmem:[%s3 + $0x1c] sm:$0xf]
  %v1100 = vld [vmem:[%s4] sm:$0x1]
  %v1102 = vlaneseq
  %v1103 = vshrl.u32 %v1102, 7
  %v1104 = vsub.s32 0, %v1103
  %v1105 = vrot.slane %v1100, %v1104
  %v1115 = vunpack.c.l.b16 %v1092
  %v1116 = vunpack.c.l.b16 %v1093
  %v1117 = vunpack.c.l.b16 %v1094
  %v1118 = vunpack.c.l.b16 %v1095
  %v1119 = vunpack.c.l.b16 %v1096
  %v1120 = vunpack.c.l.b16 %v1097
  %v1121 = vunpack.c.l.b16 %v1098
  %v1122 = vunpack.c.l.b16 %v1099
  %v1123 = vpack.c.b16 %v1116, %v1115
  %v1124 = vpack.c.b16 %v1118, %v1117
  %v1125 = vpack.c.b16 %v1120, %v1119
  %v1126 = vpack.c.b16 %v1122, %v1121
  %vm1131 = vcmask 523264
  %v1133 = vsel %vm1131, %v1091, 0
  %1135 = vmatprep.subr.bf16.mxu0 0
  %1136 = vmatpush1.bf16.msra.mxu0 %v1123
  %1137 = vmatprep.subr.bf16.mxu0 0
  %1138 = vmatpush1.bf16.msra.mxu0 %v1124
  %1139 = vmatprep.subr.bf16.mxu0 0
  %1140 = vmatpush1.bf16.msra.mxu0 %v1125
  %1141 = vmatprep.subr.bf16.mxu0 0
  %1142 = vmatpush1.bf16.msra.mxu0 %v1126
  %1143 = vmatprep.subr.bf16.mxu0 0
  %1144 = vmatpush1.bf16.msra.mxu0 0
  %1145 = vmatprep.subr.bf16.mxu0 0
  %1146 = vmatpush1.bf16.msra.mxu0 0
  %1147 = vmatprep.subr.bf16.mxu0 0
  %1148 = vmatpush1.bf16.msra.mxu0 0
  %1149 = vmatprep.subr.bf16.mxu0 0
  %1150 = vmatpush1.bf16.msra.mxu0 0
  %1151 = vmatprep.subr.bf16.mxu0 0
  %1152 = vmatpush1.bf16.msra.mxu0 0
  %1153 = vmatprep.subr.bf16.mxu0 0
  %1154 = vmatpush1.bf16.msra.mxu0 0
  %1155 = vmatprep.subr.bf16.mxu0 0
  %1156 = vmatpush1.bf16.msra.mxu0 0
  %1157 = vmatprep.subr.bf16.mxu0 0
  %1158 = vmatpush1.bf16.msra.mxu0 0
  %1159 = vmatprep.subr.bf16.mxu0 0
  %1160 = vmatpush1.bf16.msra.mxu0 0
  %1161 = vmatprep.subr.bf16.mxu0 0
  %1162 = vmatpush1.bf16.msra.mxu0 0
  %1163 = vmatprep.subr.bf16.mxu0 0
  %1164 = vmatpush1.bf16.msra.mxu0 0
  %1165 = vmatprep.subr.bf16.mxu0 0
  %1166 = vmatpush1.bf16.msra.mxu0 0
  %1167 = vmatprep.mubr.bf16.mxu0 0
  %1168 = vmatmul.mubr.bf16.gmra.mrb[0].mxu0 %v1133
  %v1169 = vpop.f32.mrb[0].mxu0
  %v1170 = vadd.f32 %v1105, %v1169
  %v1171 = vpop.f32.mrb[0].mxu0
  %v1172 = vpop.f32.mrb[0].mxu0
  %v1173 = vpop.f32.mrb[0].mxu0
  %1174 = vdwg.mxu0
  %v1175 = vmax.f32 %v1170, 0.0
  %v1176 = vpack.c.bf16 %v1175, %v1175
  %v1177 = vld [vmem:[%s5] sm:$0xf]
  %v1178 = vld [vmem:[%s5 + $0x4] sm:$0xf]
  %v1179 = vld [vmem:[%s5 + $0x8] sm:$0xf]
  %v1180 = vld [vmem:[%s5 + $0xc] sm:$0xf]
  %v1181 = vld [vmem:[%s5 + $0x10] sm:$0xf]
  %v1182 = vld [vmem:[%s5 + $0x14] sm:$0xf]
  %v1183 = vld [vmem:[%s5 + $0x18] sm:$0xf]
  %v1184 = vld [vmem:[%s5 + $0x1c] sm:$0xf]
  %v1185 = vld [vmem:[%s6] sm:$0x1]
  %v1187 = vlaneseq
  %v1188 = vshrl.u32 %v1187, 7
  %v1189 = vsub.s32 0, %v1188
  %v1190 = vrot.slane %v1185, %v1189
  %v1200 = vunpack.c.l.b16 %v1177
  %v1201 = vunpack.c.l.b16 %v1178
  %v1202 = vunpack.c.l.b16 %v1179
  %v1203 = vunpack.c.l.b16 %v1180
  %v1204 = vunpack.c.l.b16 %v1181
  %v1205 = vunpack.c.l.b16 %v1182
  %v1206 = vunpack.c.l.b16 %v1183
  %v1207 = vunpack.c.l.b16 %v1184
  %v1208 = vpack.c.b16 %v1201, %v1200
  %v1209 = vpack.c.b16 %v1203, %v1202
  %v1210 = vpack.c.b16 %v1205, %v1204
  %v1211 = vpack.c.b16 %v1207, %v1206
  %v1217 = vsel %vm1131, %v1176, 0
  %1219 = vmatprep.subr.bf16.mxu0 0
  %1220 = vmatpush1.bf16.msra.mxu0 %v1208
  %1221 = vmatprep.subr.bf16.mxu0 0
  %1222 = vmatpush1.bf16.msra.mxu0 %v1209
  %1223 = vmatprep.subr.bf16.mxu0 0
  %1224 = vmatpush1.bf16.msra.mxu0 %v1210
  %1225 = vmatprep.subr.bf16.mxu0 0
  %1226 = vmatpush1.bf16.msra.mxu0 %v1211
  %1227 = vmatprep.subr.bf16.mxu0 0
  %1228 = vmatpush1.bf16.msra.mxu0 0
  %1229 = vmatprep.subr.bf16.mxu0 0
  %1230 = vmatpush1.bf16.msra.mxu0 0
  %1231 = vmatprep.subr.bf16.mxu0 0
  %1232 = vmatpush1.bf16.msra.mxu0 0
  %1233 = vmatprep.subr.bf16.mxu0 0
  %1234 = vmatpush1.bf16.msra.mxu0 0
  %1235 = vmatprep.subr.bf16.mxu0 0
  %1236 = vmatpush1.bf16.msra.mxu0 0
  %1237 = vmatprep.subr.bf16.mxu0 0
  %1238 = vmatpush1.bf16.msra.mxu0 0
  %1239 = vmatprep.subr.bf16.mxu0 0
  %1240 = vmatpush1.bf16.msra.mxu0 0
  %1241 = vmatprep.subr.bf16.mxu0 0
  %1242 = vmatpush1.bf16.msra.mxu0 0
  %1243 = vmatprep.subr.bf16.mxu0 0
  %1244 = vmatpush1.bf16.msra.mxu0 0
  %1245 = vmatprep.subr.bf16.mxu0 0
  %1246 = vmatpush1.bf16.msra.mxu0 0
  %1247 = vmatprep.subr.bf16.mxu0 0
  %1248 = vmatpush1.bf16.msra.mxu0 0
  %1249 = vmatprep.subr.bf16.mxu0 0
  %1250 = vmatpush1.bf16.msra.mxu0 0
  %1251 = vmatprep.mubr.bf16.mxu0 0
  %1252 = vmatmul.mubr.bf16.gmra.mrb[0].mxu0 %v1217
  %v1253 = vpop.f32.mrb[0].mxu0
  %v1254 = vadd.f32 %v1190, %v1253
  %v1255 = vpop.f32.mrb[0].mxu0
  %v1256 = vpop.f32.mrb[0].mxu0
  %v1257 = vpop.f32.mrb[0].mxu0
  %1258 = vdwg.mxu0
  %1259 = vmax.xlane.f32.xlu0 %v1254
  %v1260 = vpop.xlane.xlu0 %1259
  %v1261 = vsub.f32 %v1254, %v1260
  %v1262 = vmul.f32 %v1261, 1.442695
  %v1263 = vpow.pop %v1262
  %1264 = vadd.xlane.f32.xlu0 %v1263
  %v1265 = vpop.xlane.xlu0 %1264
  %v1266 = vlog2.pop %v1265
  %v1267 = vmul.f32 %v1266, 0.6931472
  %v1268 = vsub.f32 %v1261, %v1267
  %1269 = vst [vmem:[%s7] sm:$0xff] %v1268
  // Predicated region
  $region30: #{net_forward.1} parent=0 // pred_check
    _
  $region31: #{net_forward.1} parent=0 // pred_check_branch
    %1271 = sbr.rel (0) target = $region33
  $region32: #{net_forward.1} parent=0 // pred_region
    _
  $region33: #{net_forward.1} parent=0 // pred_fallthru
    _
  // Predicated region
  $region34: #{net_forward.1} parent=0 // pred_check
    _
  $region35: #{net_forward.1} parent=0 // pred_check_branch
    %1273 = sbr.rel (0) target = $region37
  $region36: #{net_forward.1} parent=0 // pred_region
    _
  $region37: #{net_forward.1} parent=0 // pred_fallthru
    _

</llo_original>
